<compile_context>
chip_gen: v5e
topology: v5e:2x2
jax: 0.10.0
libtpu: 0.0.40
codegen_flags: <defaults>
</compile_context>

<pallas_src>
import jax
import jax.numpy as jnp
from jax.experimental import pallas as pl
from jax.experimental.pallas import tpu as pltpu

_IN, _HID, _OUT = 10, 4, 2


def _model_kernel(xT_ref, w1_ref, b1_ref, w2_ref, b2e_ref, oT_ref):
    """Lane-dense forward for one batch tile.

    xT_ref : [10, TB] VMEM   (features x batch-tile, batch on lanes)
    w1_ref : [10, 4]  SMEM    b1_ref : [4] SMEM
    w2_ref : [4, 2]   SMEM    b2e_ref: [2] SMEM  (fc2 bias with "+1" folded in)
    oT_ref : [2, TB]  VMEM
    """
    # Elementwise chain on the whole tile (VPU + EUP), full 128-lane vregs.
    g = xT_ref[...]
    g = jnp.tanh(g + g * g * g * 0.044715)

    # fc1 + tanh as scalar-broadcast FMAs (no MXU for a degenerate 10x4 matmul).
    h_rows = []
    for n in range(_HID):
        acc = w1_ref[0, n] * g[0:1, :]
        for k in range(1, _IN):
            acc = acc + w1_ref[k, n] * g[k:k + 1, :]
        h_rows.append(jnp.tanh(acc + b1_ref[n]))

    # fc2; the "+1" on tanh(v1) is already folded into b2_eff.
    out_rows = []
    for m in range(_OUT):
        acc = w2_ref[0, m] * h_rows[0]
        for n in range(1, _HID):
            acc = acc + w2_ref[n, m] * h_rows[n]
        out_rows.append(acc + b2e_ref[m])

    oT_ref[...] = jnp.concatenate(out_rows, axis=0).astype(oT_ref.dtype)


def _round_up(n, m):
    return ((n + m - 1) // m) * m


def model_forward(x, w1, b1, w2, b2, *, tb=512):
    """x: [B, 10]; w1: [10, 4]; b1: [4]; w2: [4, 2]; b2: [2] -> [B, 2]."""
    B = x.shape[0]
    dtype = x.dtype

    # Fold "+1":  (tanh(v1)+1) @ w2 + b2  ==  tanh(v1) @ w2 + (b2 + w2.sum(0)).
    b2_eff = (b2 + jnp.sum(w2, axis=0)).astype(jnp.float32)

    # Lane-dense layout: batch on the last (lane) axis; pad batch to the tile.
    xT = x.T  # [10, B]
    TB = min(_round_up(tb, 128), _round_up(B, 128))   # multiple of 128
    B_pad = _round_up(B, TB)
    if B_pad != B:
        xT = jnp.pad(xT, ((0, 0), (0, B_pad - B)))

    grid = (B_pad // TB,)
    smem = lambda: pl.BlockSpec(memory_space=pltpu.MemorySpace.SMEM)

    flops_per_row = 4 * _IN + (2 * _IN * _HID + _HID) + (2 * _HID * _OUT + _OUT)
    param_bytes = 4 * (_IN * _HID + _HID + _HID * _OUT + _OUT)

    oT = pl.pallas_call(
        _model_kernel,
        out_shape=jax.ShapeDtypeStruct((_OUT, B_pad), dtype),
        grid=grid,
        in_specs=[
            pl.BlockSpec((_IN, TB), lambda i: (0, i)),   # x tile, double-buffered
            smem(), smem(), smem(), smem(),              # weights/biases in SMEM
        ],
        out_specs=pl.BlockSpec((_OUT, TB), lambda i: (0, i)),
        compiler_params=pltpu.CompilerParams(
            dimension_semantics=("parallel",),           # shard tiles across TCs (v7x)
        ),
        cost_estimate=pl.CostEstimate(
            flops=flops_per_row * B_pad,
            transcendentals=(_IN + _HID) * B_pad,
            bytes_accessed=(_IN + _OUT) * 4 * B_pad + param_bytes,
        ),
    )(xT.astype(jnp.float32), w1.astype(jnp.float32), b1.astype(jnp.float32),
      w2.astype(jnp.float32), b2_eff)

    return oT[:, :B].T.astype(dtype)


def init_params(key):
    # Matches torch init: fc weights ~ U(-0.005, 0.005), biases = 0.
    k1, k2 = jax.random.split(key)
    # PyTorch fc1.weight is [4, 10]; store transposed as [10, 4].
    w1 = jax.random.uniform(k1, (_IN, _HID), jnp.float32, -0.005, 0.005)
    b1 = jnp.zeros((_HID,), jnp.float32)
    # PyTorch fc2.weight is [2, 4]; store transposed as [4, 2].
    w2 = jax.random.uniform(k2, (_HID, _OUT), jnp.float32, -0.005, 0.005)
    b2 = jnp.zeros((_OUT,), jnp.float32)
    return w1, b1, w2, b2


def reference_forward(x, w1, b1, w2, b2):
    h = x + x * x * x * 0.044715
    h = jnp.tanh(h)
    v1 = h @ w1 + b1
    v3 = jnp.tanh(v1) + 1.0
    return v3 @ w2 + b2


if __name__ == "__main__":
    key = jax.random.PRNGKey(0)
    kx, kp = jax.random.split(key)
    w1, b1, w2, b2 = init_params(kp)

    # Multi-tile grid: batch=256, TB=128 -> grid=(2,), batch on the lane axis.
    x = jax.random.normal(kx, (256, _IN), jnp.float32)
    out = jax.block_until_ready(model_forward(x, w1, b1, w2, b2, tb=128))
    ref = reference_forward(x, w1, b1, w2, b2)
    assert out.shape == (256, _OUT), out.shape
    assert jnp.allclose(out, ref, atol=1e-5, rtol=1e-5), "mismatch vs reference"

    # Ragged batch (exercises lane padding of the tail tile).
    x2 = jax.random.normal(kx, (200, _IN), jnp.float32)
    out2 = jax.block_until_ready(model_forward(x2, w1, b1, w2, b2))
    ref2 = reference_forward(x2, w1, b1, w2, b2)
    assert out2.shape == (200, _OUT), out2.shape
    assert jnp.allclose(out2, ref2, atol=1e-5, rtol=1e-5), "mismatch vs reference"

    print("KERNEL_OK")
</pallas_src>

<mosaic_0001>
module attributes {stable_mosaic.version = 11 : i64} {
  func.func @_model_kernel(%arg0: i32, %arg1: memref<10x128xf32, #tpu.memory_space<vmem>>, %arg2: memref<10x4xf32, #tpu.memory_space<smem>>, %arg3: memref<4xf32, #tpu.memory_space<smem>>, %arg4: memref<4x2xf32, #tpu.memory_space<smem>>, %arg5: memref<2xf32, #tpu.memory_space<smem>>, %arg6: memref<2x128xf32, #tpu.memory_space<vmem>>) attributes {dimension_semantics = [#tpu.dimension_semantics<parallel>], iteration_bounds = array<i64: 2>, scalar_prefetch = 0 : i64, scratch_operands = 0 : i64, tpu.core_type = #tpu.core_type<tc>, window_params = [{transform_indices = @transform_0, window_bounds = array<i64: 10, 128>}, {transform_indices = @transform_1, window_bounds = array<i64: 10, 4>}, {transform_indices = @transform_2, window_bounds = array<i64: 4>}, {transform_indices = @transform_3, window_bounds = array<i64: 4, 2>}, {transform_indices = @transform_4, window_bounds = array<i64: 2>}, {transform_indices = @transform_5, window_bounds = array<i64: 2, 128>}]} {
    %c0 = arith.constant 0 : index
    %c0_0 = arith.constant 0 : index
    %0 = vector.load %arg1[%c0, %c0_0] : memref<10x128xf32, #tpu.memory_space<vmem>>, vector<10x128xf32>
    %1 = arith.mulf %0, %0 : vector<10x128xf32>
    %2 = arith.mulf %1, %0 : vector<10x128xf32>
    %cst = arith.constant 4.471500e-02 : f32
    %3 = vector.broadcast %cst : f32 to vector<10x128xf32>
    %4 = arith.mulf %2, %3 : vector<10x128xf32>
    %5 = arith.addf %0, %4 : vector<10x128xf32>
    %6 = math.tanh %5 : vector<10x128xf32>
    %c0_1 = arith.constant 0 : index
    %c0_2 = arith.constant 0 : index
    %7 = memref.load %arg2[%c0_1, %c0_2] : memref<10x4xf32, #tpu.memory_space<smem>>
    %8 = vector.extract_strided_slice %6 {offsets = [0, 0], sizes = [1, 128], strides = [1, 1]} : vector<10x128xf32> to vector<1x128xf32>
    %9 = vector.broadcast %7 : f32 to vector<1x128xf32>
    %10 = arith.mulf %9, %8 : vector<1x128xf32>
    %c1 = arith.constant 1 : index
    %c0_3 = arith.constant 0 : index
    %11 = memref.load %arg2[%c1, %c0_3] : memref<10x4xf32, #tpu.memory_space<smem>>
    %12 = vector.extract_strided_slice %6 {offsets = [1, 0], sizes = [1, 128], strides = [1, 1]} : vector<10x128xf32> to vector<1x128xf32>
    %13 = vector.broadcast %11 : f32 to vector<1x128xf32>
    %14 = arith.mulf %13, %12 : vector<1x128xf32>
    %15 = arith.addf %10, %14 : vector<1x128xf32>
    %c2 = arith.constant 2 : index
    %c0_4 = arith.constant 0 : index
    %16 = memref.load %arg2[%c2, %c0_4] : memref<10x4xf32, #tpu.memory_space<smem>>
    %17 = vector.extract_strided_slice %6 {offsets = [2, 0], sizes = [1, 128], strides = [1, 1]} : vector<10x128xf32> to vector<1x128xf32>
    %18 = vector.broadcast %16 : f32 to vector<1x128xf32>
    %19 = arith.mulf %18, %17 : vector<1x128xf32>
    %20 = arith.addf %15, %19 : vector<1x128xf32>
    %c3 = arith.constant 3 : index
    %c0_5 = arith.constant 0 : index
    %21 = memref.load %arg2[%c3, %c0_5] : memref<10x4xf32, #tpu.memory_space<smem>>
    %22 = vector.extract_strided_slice %6 {offsets = [3, 0], sizes = [1, 128], strides = [1, 1]} : vector<10x128xf32> to vector<1x128xf32>
    %23 = vector.broadcast %21 : f32 to vector<1x128xf32>
    %24 = arith.mulf %23, %22 : vector<1x128xf32>
    %25 = arith.addf %20, %24 : vector<1x128xf32>
    %c4 = arith.constant 4 : index
    %c0_6 = arith.constant 0 : index
    %26 = memref.load %arg2[%c4, %c0_6] : memref<10x4xf32, #tpu.memory_space<smem>>
    %27 = vector.extract_strided_slice %6 {offsets = [4, 0], sizes = [1, 128], strides = [1, 1]} : vector<10x128xf32> to vector<1x128xf32>
    %28 = vector.broadcast %26 : f32 to vector<1x128xf32>
    %29 = arith.mulf %28, %27 : vector<1x128xf32>
    %30 = arith.addf %25, %29 : vector<1x128xf32>
    %c5 = arith.constant 5 : index
    %c0_7 = arith.constant 0 : index
    %31 = memref.load %arg2[%c5, %c0_7] : memref<10x4xf32, #tpu.memory_space<smem>>
    %32 = vector.extract_strided_slice %6 {offsets = [5, 0], sizes = [1, 128], strides = [1, 1]} : vector<10x128xf32> to vector<1x128xf32>
    %33 = vector.broadcast %31 : f32 to vector<1x128xf32>
    %34 = arith.mulf %33, %32 : vector<1x128xf32>
    %35 = arith.addf %30, %34 : vector<1x128xf32>
    %c6 = arith.constant 6 : index
    %c0_8 = arith.constant 0 : index
    %36 = memref.load %arg2[%c6, %c0_8] : memref<10x4xf32, #tpu.memory_space<smem>>
    %37 = vector.extract_strided_slice %6 {offsets = [6, 0], sizes = [1, 128], strides = [1, 1]} : vector<10x128xf32> to vector<1x128xf32>
    %38 = vector.broadcast %36 : f32 to vector<1x128xf32>
    %39 = arith.mulf %38, %37 : vector<1x128xf32>
    %40 = arith.addf %35, %39 : vector<1x128xf32>
    %c7 = arith.constant 7 : index
    %c0_9 = arith.constant 0 : index
    %41 = memref.load %arg2[%c7, %c0_9] : memref<10x4xf32, #tpu.memory_space<smem>>
    %42 = vector.extract_strided_slice %6 {offsets = [7, 0], sizes = [1, 128], strides = [1, 1]} : vector<10x128xf32> to vector<1x128xf32>
    %43 = vector.broadcast %41 : f32 to vector<1x128xf32>
    %44 = arith.mulf %43, %42 : vector<1x128xf32>
    %45 = arith.addf %40, %44 : vector<1x128xf32>
    %c8 = arith.constant 8 : index
    %c0_10 = arith.constant 0 : index
    %46 = memref.load %arg2[%c8, %c0_10] : memref<10x4xf32, #tpu.memory_space<smem>>
    %47 = vector.extract_strided_slice %6 {offsets = [8, 0], sizes = [1, 128], strides = [1, 1]} : vector<10x128xf32> to vector<1x128xf32>
    %48 = vector.broadcast %46 : f32 to vector<1x128xf32>
    %49 = arith.mulf %48, %47 : vector<1x128xf32>
    %50 = arith.addf %45, %49 : vector<1x128xf32>
    %c9 = arith.constant 9 : index
    %c0_11 = arith.constant 0 : index
    %51 = memref.load %arg2[%c9, %c0_11] : memref<10x4xf32, #tpu.memory_space<smem>>
    %52 = vector.extract_strided_slice %6 {offsets = [9, 0], sizes = [1, 128], strides = [1, 1]} : vector<10x128xf32> to vector<1x128xf32>
    %53 = vector.broadcast %51 : f32 to vector<1x128xf32>
    %54 = arith.mulf %53, %52 : vector<1x128xf32>
    %55 = arith.addf %50, %54 : vector<1x128xf32>
    %c0_12 = arith.constant 0 : index
    %56 = memref.load %arg3[%c0_12] : memref<4xf32, #tpu.memory_space<smem>>
    %57 = vector.broadcast %56 : f32 to vector<1x128xf32>
    %58 = arith.addf %55, %57 : vector<1x128xf32>
    %59 = math.tanh %58 : vector<1x128xf32>
    %c0_13 = arith.constant 0 : index
    %c1_14 = arith.constant 1 : index
    %60 = memref.load %arg2[%c0_13, %c1_14] : memref<10x4xf32, #tpu.memory_space<smem>>
    %61 = vector.extract_strided_slice %6 {offsets = [0, 0], sizes = [1, 128], strides = [1, 1]} : vector<10x128xf32> to vector<1x128xf32>
    %62 = vector.broadcast %60 : f32 to vector<1x128xf32>
    %63 = arith.mulf %62, %61 : vector<1x128xf32>
    %c1_15 = arith.constant 1 : index
    %c1_16 = arith.constant 1 : index
    %64 = memref.load %arg2[%c1_15, %c1_16] : memref<10x4xf32, #tpu.memory_space<smem>>
    %65 = vector.extract_strided_slice %6 {offsets = [1, 0], sizes = [1, 128], strides = [1, 1]} : vector<10x128xf32> to vector<1x128xf32>
    %66 = vector.broadcast %64 : f32 to vector<1x128xf32>
    %67 = arith.mulf %66, %65 : vector<1x128xf32>
    %68 = arith.addf %63, %67 : vector<1x128xf32>
    %c2_17 = arith.constant 2 : index
    %c1_18 = arith.constant 1 : index
    %69 = memref.load %arg2[%c2_17, %c1_18] : memref<10x4xf32, #tpu.memory_space<smem>>
    %70 = vector.extract_strided_slice %6 {offsets = [2, 0], sizes = [1, 128], strides = [1, 1]} : vector<10x128xf32> to vector<1x128xf32>
    %71 = vector.broadcast %69 : f32 to vector<1x128xf32>
    %72 = arith.mulf %71, %70 : vector<1x128xf32>
    %73 = arith.addf %68, %72 : vector<1x128xf32>
    %c3_19 = arith.constant 3 : index
    %c1_20 = arith.constant 1 : index
    %74 = memref.load %arg2[%c3_19, %c1_20] : memref<10x4xf32, #tpu.memory_space<smem>>
    %75 = vector.extract_strided_slice %6 {offsets = [3, 0], sizes = [1, 128], strides = [1, 1]} : vector<10x128xf32> to vector<1x128xf32>
    %76 = vector.broadcast %74 : f32 to vector<1x128xf32>
    %77 = arith.mulf %76, %75 : vector<1x128xf32>
    %78 = arith.addf %73, %77 : vector<1x128xf32>
    %c4_21 = arith.constant 4 : index
    %c1_22 = arith.constant 1 : index
    %79 = memref.load %arg2[%c4_21, %c1_22] : memref<10x4xf32, #tpu.memory_space<smem>>
    %80 = vector.extract_strided_slice %6 {offsets = [4, 0], sizes = [1, 128], strides = [1, 1]} : vector<10x128xf32> to vector<1x128xf32>
    %81 = vector.broadcast %79 : f32 to vector<1x128xf32>
    %82 = arith.mulf %81, %80 : vector<1x128xf32>
    %83 = arith.addf %78, %82 : vector<1x128xf32>
    %c5_23 = arith.constant 5 : index
    %c1_24 = arith.constant 1 : index
    %84 = memref.load %arg2[%c5_23, %c1_24] : memref<10x4xf32, #tpu.memory_space<smem>>
    %85 = vector.extract_strided_slice %6 {offsets = [5, 0], sizes = [1, 128], strides = [1, 1]} : vector<10x128xf32> to vector<1x128xf32>
    %86 = vector.broadcast %84 : f32 to vector<1x128xf32>
    %87 = arith.mulf %86, %85 : vector<1x128xf32>
    %88 = arith.addf %83, %87 : vector<1x128xf32>
    %c6_25 = arith.constant 6 : index
    %c1_26 = arith.constant 1 : index
    %89 = memref.load %arg2[%c6_25, %c1_26] : memref<10x4xf32, #tpu.memory_space<smem>>
    %90 = vector.extract_strided_slice %6 {offsets = [6, 0], sizes = [1, 128], strides = [1, 1]} : vector<10x128xf32> to vector<1x128xf32>
    %91 = vector.broadcast %89 : f32 to vector<1x128xf32>
    %92 = arith.mulf %91, %90 : vector<1x128xf32>
    %93 = arith.addf %88, %92 : vector<1x128xf32>
    %c7_27 = arith.constant 7 : index
    %c1_28 = arith.constant 1 : index
    %94 = memref.load %arg2[%c7_27, %c1_28] : memref<10x4xf32, #tpu.memory_space<smem>>
    %95 = vector.extract_strided_slice %6 {offsets = [7, 0], sizes = [1, 128], strides = [1, 1]} : vector<10x128xf32> to vector<1x128xf32>
    %96 = vector.broadcast %94 : f32 to vector<1x128xf32>
    %97 = arith.mulf %96, %95 : vector<1x128xf32>
    %98 = arith.addf %93, %97 : vector<1x128xf32>
    %c8_29 = arith.constant 8 : index
    %c1_30 = arith.constant 1 : index
    %99 = memref.load %arg2[%c8_29, %c1_30] : memref<10x4xf32, #tpu.memory_space<smem>>
    %100 = vector.extract_strided_slice %6 {offsets = [8, 0], sizes = [1, 128], strides = [1, 1]} : vector<10x128xf32> to vector<1x128xf32>
    %101 = vector.broadcast %99 : f32 to vector<1x128xf32>
    %102 = arith.mulf %101, %100 : vector<1x128xf32>
    %103 = arith.addf %98, %102 : vector<1x128xf32>
    %c9_31 = arith.constant 9 : index
    %c1_32 = arith.constant 1 : index
    %104 = memref.load %arg2[%c9_31, %c1_32] : memref<10x4xf32, #tpu.memory_space<smem>>
    %105 = vector.extract_strided_slice %6 {offsets = [9, 0], sizes = [1, 128], strides = [1, 1]} : vector<10x128xf32> to vector<1x128xf32>
    %106 = vector.broadcast %104 : f32 to vector<1x128xf32>
    %107 = arith.mulf %106, %105 : vector<1x128xf32>
    %108 = arith.addf %103, %107 : vector<1x128xf32>
    %c1_33 = arith.constant 1 : index
    %109 = memref.load %arg3[%c1_33] : memref<4xf32, #tpu.memory_space<smem>>
    %110 = vector.broadcast %109 : f32 to vector<1x128xf32>
    %111 = arith.addf %108, %110 : vector<1x128xf32>
    %112 = math.tanh %111 : vector<1x128xf32>
    %c0_34 = arith.constant 0 : index
    %c2_35 = arith.constant 2 : index
    %113 = memref.load %arg2[%c0_34, %c2_35] : memref<10x4xf32, #tpu.memory_space<smem>>
    %114 = vector.extract_strided_slice %6 {offsets = [0, 0], sizes = [1, 128], strides = [1, 1]} : vector<10x128xf32> to vector<1x128xf32>
    %115 = vector.broadcast %113 : f32 to vector<1x128xf32>
    %116 = arith.mulf %115, %114 : vector<1x128xf32>
    %c1_36 = arith.constant 1 : index
    %c2_37 = arith.constant 2 : index
    %117 = memref.load %arg2[%c1_36, %c2_37] : memref<10x4xf32, #tpu.memory_space<smem>>
    %118 = vector.extract_strided_slice %6 {offsets = [1, 0], sizes = [1, 128], strides = [1, 1]} : vector<10x128xf32> to vector<1x128xf32>
    %119 = vector.broadcast %117 : f32 to vector<1x128xf32>
    %120 = arith.mulf %119, %118 : vector<1x128xf32>
    %121 = arith.addf %116, %120 : vector<1x128xf32>
    %c2_38 = arith.constant 2 : index
    %c2_39 = arith.constant 2 : index
    %122 = memref.load %arg2[%c2_38, %c2_39] : memref<10x4xf32, #tpu.memory_space<smem>>
    %123 = vector.extract_strided_slice %6 {offsets = [2, 0], sizes = [1, 128], strides = [1, 1]} : vector<10x128xf32> to vector<1x128xf32>
    %124 = vector.broadcast %122 : f32 to vector<1x128xf32>
    %125 = arith.mulf %124, %123 : vector<1x128xf32>
    %126 = arith.addf %121, %125 : vector<1x128xf32>
    %c3_40 = arith.constant 3 : index
    %c2_41 = arith.constant 2 : index
    %127 = memref.load %arg2[%c3_40, %c2_41] : memref<10x4xf32, #tpu.memory_space<smem>>
    %128 = vector.extract_strided_slice %6 {offsets = [3, 0], sizes = [1, 128], strides = [1, 1]} : vector<10x128xf32> to vector<1x128xf32>
    %129 = vector.broadcast %127 : f32 to vector<1x128xf32>
    %130 = arith.mulf %129, %128 : vector<1x128xf32>
    %131 = arith.addf %126, %130 : vector<1x128xf32>
    %c4_42 = arith.constant 4 : index
    %c2_43 = arith.constant 2 : index
    %132 = memref.load %arg2[%c4_42, %c2_43] : memref<10x4xf32, #tpu.memory_space<smem>>
    %133 = vector.extract_strided_slice %6 {offsets = [4, 0], sizes = [1, 128], strides = [1, 1]} : vector<10x128xf32> to vector<1x128xf32>
    %134 = vector.broadcast %132 : f32 to vector<1x128xf32>
    %135 = arith.mulf %134, %133 : vector<1x128xf32>
    %136 = arith.addf %131, %135 : vector<1x128xf32>
    %c5_44 = arith.constant 5 : index
    %c2_45 = arith.constant 2 : index
    %137 = memref.load %arg2[%c5_44, %c2_45] : memref<10x4xf32, #tpu.memory_space<smem>>
    %138 = vector.extract_strided_slice %6 {offsets = [5, 0], sizes = [1, 128], strides = [1, 1]} : vector<10x128xf32> to vector<1x128xf32>
    %139 = vector.broadcast %137 : f32 to vector<1x128xf32>
    %140 = arith.mulf %139, %138 : vector<1x128xf32>
    %141 = arith.addf %136, %140 : vector<1x128xf32>
    %c6_46 = arith.constant 6 : index
    %c2_47 = arith.constant 2 : index
    %142 = memref.load %arg2[%c6_46, %c2_47] : memref<10x4xf32, #tpu.memory_space<smem>>
    %143 = vector.extract_strided_slice %6 {offsets = [6, 0], sizes = [1, 128], strides = [1, 1]} : vector<10x128xf32> to vector<1x128xf32>
    %144 = vector.broadcast %142 : f32 to vector<1x128xf32>
    %145 = arith.mulf %144, %143 : vector<1x128xf32>
    %146 = arith.addf %141, %145 : vector<1x128xf32>
    %c7_48 = arith.constant 7 : index
    %c2_49 = arith.constant 2 : index
    %147 = memref.load %arg2[%c7_48, %c2_49] : memref<10x4xf32, #tpu.memory_space<smem>>
    %148 = vector.extract_strided_slice %6 {offsets = [7, 0], sizes = [1, 128], strides = [1, 1]} : vector<10x128xf32> to vector<1x128xf32>
    %149 = vector.broadcast %147 : f32 to vector<1x128xf32>
    %150 = arith.mulf %149, %148 : vector<1x128xf32>
    %151 = arith.addf %146, %150 : vector<1x128xf32>
    %c8_50 = arith.constant 8 : index
    %c2_51 = arith.constant 2 : index
    %152 = memref.load %arg2[%c8_50, %c2_51] : memref<10x4xf32, #tpu.memory_space<smem>>
    %153 = vector.extract_strided_slice %6 {offsets = [8, 0], sizes = [1, 128], strides = [1, 1]} : vector<10x128xf32> to vector<1x128xf32>
    %154 = vector.broadcast %152 : f32 to vector<1x128xf32>
    %155 = arith.mulf %154, %153 : vector<1x128xf32>
    %156 = arith.addf %151, %155 : vector<1x128xf32>
    %c9_52 = arith.constant 9 : index
    %c2_53 = arith.constant 2 : index
    %157 = memref.load %arg2[%c9_52, %c2_53] : memref<10x4xf32, #tpu.memory_space<smem>>
    %158 = vector.extract_strided_slice %6 {offsets = [9, 0], sizes = [1, 128], strides = [1, 1]} : vector<10x128xf32> to vector<1x128xf32>
    %159 = vector.broadcast %157 : f32 to vector<1x128xf32>
    %160 = arith.mulf %159, %158 : vector<1x128xf32>
    %161 = arith.addf %156, %160 : vector<1x128xf32>
    %c2_54 = arith.constant 2 : index
    %162 = memref.load %arg3[%c2_54] : memref<4xf32, #tpu.memory_space<smem>>
    %163 = vector.broadcast %162 : f32 to vector<1x128xf32>
    %164 = arith.addf %161, %163 : vector<1x128xf32>
    %165 = math.tanh %164 : vector<1x128xf32>
    %c0_55 = arith.constant 0 : index
    %c3_56 = arith.constant 3 : index
    %166 = memref.load %arg2[%c0_55, %c3_56] : memref<10x4xf32, #tpu.memory_space<smem>>
    %167 = vector.extract_strided_slice %6 {offsets = [0, 0], sizes = [1, 128], strides = [1, 1]} : vector<10x128xf32> to vector<1x128xf32>
    %168 = vector.broadcast %166 : f32 to vector<1x128xf32>
    %169 = arith.mulf %168, %167 : vector<1x128xf32>
    %c1_57 = arith.constant 1 : index
    %c3_58 = arith.constant 3 : index
    %170 = memref.load %arg2[%c1_57, %c3_58] : memref<10x4xf32, #tpu.memory_space<smem>>
    %171 = vector.extract_strided_slice %6 {offsets = [1, 0], sizes = [1, 128], strides = [1, 1]} : vector<10x128xf32> to vector<1x128xf32>
    %172 = vector.broadcast %170 : f32 to vector<1x128xf32>
    %173 = arith.mulf %172, %171 : vector<1x128xf32>
    %174 = arith.addf %169, %173 : vector<1x128xf32>
    %c2_59 = arith.constant 2 : index
    %c3_60 = arith.constant 3 : index
    %175 = memref.load %arg2[%c2_59, %c3_60] : memref<10x4xf32, #tpu.memory_space<smem>>
    %176 = vector.extract_strided_slice %6 {offsets = [2, 0], sizes = [1, 128], strides = [1, 1]} : vector<10x128xf32> to vector<1x128xf32>
    %177 = vector.broadcast %175 : f32 to vector<1x128xf32>
    %178 = arith.mulf %177, %176 : vector<1x128xf32>
    %179 = arith.addf %174, %178 : vector<1x128xf32>
    %c3_61 = arith.constant 3 : index
    %c3_62 = arith.constant 3 : index
    %180 = memref.load %arg2[%c3_61, %c3_62] : memref<10x4xf32, #tpu.memory_space<smem>>
    %181 = vector.extract_strided_slice %6 {offsets = [3, 0], sizes = [1, 128], strides = [1, 1]} : vector<10x128xf32> to vector<1x128xf32>
    %182 = vector.broadcast %180 : f32 to vector<1x128xf32>
    %183 = arith.mulf %182, %181 : vector<1x128xf32>
    %184 = arith.addf %179, %183 : vector<1x128xf32>
    %c4_63 = arith.constant 4 : index
    %c3_64 = arith.constant 3 : index
    %185 = memref.load %arg2[%c4_63, %c3_64] : memref<10x4xf32, #tpu.memory_space<smem>>
    %186 = vector.extract_strided_slice %6 {offsets = [4, 0], sizes = [1, 128], strides = [1, 1]} : vector<10x128xf32> to vector<1x128xf32>
    %187 = vector.broadcast %185 : f32 to vector<1x128xf32>
    %188 = arith.mulf %187, %186 : vector<1x128xf32>
    %189 = arith.addf %184, %188 : vector<1x128xf32>
    %c5_65 = arith.constant 5 : index
    %c3_66 = arith.constant 3 : index
    %190 = memref.load %arg2[%c5_65, %c3_66] : memref<10x4xf32, #tpu.memory_space<smem>>
    %191 = vector.extract_strided_slice %6 {offsets = [5, 0], sizes = [1, 128], strides = [1, 1]} : vector<10x128xf32> to vector<1x128xf32>
    %192 = vector.broadcast %190 : f32 to vector<1x128xf32>
    %193 = arith.mulf %192, %191 : vector<1x128xf32>
    %194 = arith.addf %189, %193 : vector<1x128xf32>
    %c6_67 = arith.constant 6 : index
    %c3_68 = arith.constant 3 : index
    %195 = memref.load %arg2[%c6_67, %c3_68] : memref<10x4xf32, #tpu.memory_space<smem>>
    %196 = vector.extract_strided_slice %6 {offsets = [6, 0], sizes = [1, 128], strides = [1, 1]} : vector<10x128xf32> to vector<1x128xf32>
    %197 = vector.broadcast %195 : f32 to vector<1x128xf32>
    %198 = arith.mulf %197, %196 : vector<1x128xf32>
    %199 = arith.addf %194, %198 : vector<1x128xf32>
    %c7_69 = arith.constant 7 : index
    %c3_70 = arith.constant 3 : index
    %200 = memref.load %arg2[%c7_69, %c3_70] : memref<10x4xf32, #tpu.memory_space<smem>>
    %201 = vector.extract_strided_slice %6 {offsets = [7, 0], sizes = [1, 128], strides = [1, 1]} : vector<10x128xf32> to vector<1x128xf32>
    %202 = vector.broadcast %200 : f32 to vector<1x128xf32>
    %203 = arith.mulf %202, %201 : vector<1x128xf32>
    %204 = arith.addf %199, %203 : vector<1x128xf32>
    %c8_71 = arith.constant 8 : index
    %c3_72 = arith.constant 3 : index
    %205 = memref.load %arg2[%c8_71, %c3_72] : memref<10x4xf32, #tpu.memory_space<smem>>
    %206 = vector.extract_strided_slice %6 {offsets = [8, 0], sizes = [1, 128], strides = [1, 1]} : vector<10x128xf32> to vector<1x128xf32>
    %207 = vector.broadcast %205 : f32 to vector<1x128xf32>
    %208 = arith.mulf %207, %206 : vector<1x128xf32>
    %209 = arith.addf %204, %208 : vector<1x128xf32>
    %c9_73 = arith.constant 9 : index
    %c3_74 = arith.constant 3 : index
    %210 = memref.load %arg2[%c9_73, %c3_74] : memref<10x4xf32, #tpu.memory_space<smem>>
    %211 = vector.extract_strided_slice %6 {offsets = [9, 0], sizes = [1, 128], strides = [1, 1]} : vector<10x128xf32> to vector<1x128xf32>
    %212 = vector.broadcast %210 : f32 to vector<1x128xf32>
    %213 = arith.mulf %212, %211 : vector<1x128xf32>
    %214 = arith.addf %209, %213 : vector<1x128xf32>
    %c3_75 = arith.constant 3 : index
    %215 = memref.load %arg3[%c3_75] : memref<4xf32, #tpu.memory_space<smem>>
    %216 = vector.broadcast %215 : f32 to vector<1x128xf32>
    %217 = arith.addf %214, %216 : vector<1x128xf32>
    %218 = math.tanh %217 : vector<1x128xf32>
    %c0_76 = arith.constant 0 : index
    %c0_77 = arith.constant 0 : index
    %219 = memref.load %arg4[%c0_76, %c0_77] : memref<4x2xf32, #tpu.memory_space<smem>>
    %220 = vector.broadcast %219 : f32 to vector<1x128xf32>
    %221 = arith.mulf %220, %59 : vector<1x128xf32>
    %c1_78 = arith.constant 1 : index
    %c0_79 = arith.constant 0 : index
    %222 = memref.load %arg4[%c1_78, %c0_79] : memref<4x2xf32, #tpu.memory_space<smem>>
    %223 = vector.broadcast %222 : f32 to vector<1x128xf32>
    %224 = arith.mulf %223, %112 : vector<1x128xf32>
    %225 = arith.addf %221, %224 : vector<1x128xf32>
    %c2_80 = arith.constant 2 : index
    %c0_81 = arith.constant 0 : index
    %226 = memref.load %arg4[%c2_80, %c0_81] : memref<4x2xf32, #tpu.memory_space<smem>>
    %227 = vector.broadcast %226 : f32 to vector<1x128xf32>
    %228 = arith.mulf %227, %165 : vector<1x128xf32>
    %229 = arith.addf %225, %228 : vector<1x128xf32>
    %c3_82 = arith.constant 3 : index
    %c0_83 = arith.constant 0 : index
    %230 = memref.load %arg4[%c3_82, %c0_83] : memref<4x2xf32, #tpu.memory_space<smem>>
    %231 = vector.broadcast %230 : f32 to vector<1x128xf32>
    %232 = arith.mulf %231, %218 : vector<1x128xf32>
    %233 = arith.addf %229, %232 : vector<1x128xf32>
    %c0_84 = arith.constant 0 : index
    %234 = memref.load %arg5[%c0_84] : memref<2xf32, #tpu.memory_space<smem>>
    %235 = vector.broadcast %234 : f32 to vector<1x128xf32>
    %236 = arith.addf %233, %235 : vector<1x128xf32>
    %c0_85 = arith.constant 0 : index
    %c1_86 = arith.constant 1 : index
    %237 = memref.load %arg4[%c0_85, %c1_86] : memref<4x2xf32, #tpu.memory_space<smem>>
    %238 = vector.broadcast %237 : f32 to vector<1x128xf32>
    %239 = arith.mulf %238, %59 : vector<1x128xf32>
    %c1_87 = arith.constant 1 : index
    %c1_88 = arith.constant 1 : index
    %240 = memref.load %arg4[%c1_87, %c1_88] : memref<4x2xf32, #tpu.memory_space<smem>>
    %241 = vector.broadcast %240 : f32 to vector<1x128xf32>
    %242 = arith.mulf %241, %112 : vector<1x128xf32>
    %243 = arith.addf %239, %242 : vector<1x128xf32>
    %c2_89 = arith.constant 2 : index
    %c1_90 = arith.constant 1 : index
    %244 = memref.load %arg4[%c2_89, %c1_90] : memref<4x2xf32, #tpu.memory_space<smem>>
    %245 = vector.broadcast %244 : f32 to vector<1x128xf32>
    %246 = arith.mulf %245, %165 : vector<1x128xf32>
    %247 = arith.addf %243, %246 : vector<1x128xf32>
    %c3_91 = arith.constant 3 : index
    %c1_92 = arith.constant 1 : index
    %248 = memref.load %arg4[%c3_91, %c1_92] : memref<4x2xf32, #tpu.memory_space<smem>>
    %249 = vector.broadcast %248 : f32 to vector<1x128xf32>
    %250 = arith.mulf %249, %218 : vector<1x128xf32>
    %251 = arith.addf %247, %250 : vector<1x128xf32>
    %c1_93 = arith.constant 1 : index
    %252 = memref.load %arg5[%c1_93] : memref<2xf32, #tpu.memory_space<smem>>
    %253 = vector.broadcast %252 : f32 to vector<1x128xf32>
    %254 = arith.addf %251, %253 : vector<1x128xf32>
    %255 = tpu.concatenate %236, %254 in 0 : vector<1x128xf32>, vector<1x128xf32> -> vector<2x128xf32>
    %c0_94 = arith.constant 0 : index
    %c0_95 = arith.constant 0 : index
    %256 = vector.load %arg6[%c0_94, %c0_95] : memref<2x128xf32, #tpu.memory_space<vmem>>, vector<2x128xf32>
    tpu.vector_store %arg6[%c0_94, %c0_95], %255 {strides = array<i32>} : memref<2x128xf32, #tpu.memory_space<vmem>>, vector<2x128xf32>,
    return
  }
  func.func @transform_0(%arg0: i32) -> (i32, i32) {
    %c0_i32 = arith.constant 0 : i32
    %c0_i32_0 = arith.constant 0 : i32
    return %c0_i32, %arg0 : i32, i32
  }
  func.func @transform_1(%arg0: i32) -> (i32, i32) {
    %c0_i32 = arith.constant 0 : i32
    %c0_i32_0 = arith.constant 0 : i32
    %c0_i32_1 = arith.constant 0 : i32
    return %c0_i32, %c0_i32_0 : i32, i32
  }
  func.func @transform_2(%arg0: i32) -> i32 {
    %c0_i32 = arith.constant 0 : i32
    %c0_i32_0 = arith.constant 0 : i32
    return %c0_i32 : i32
  }
  func.func @transform_3(%arg0: i32) -> (i32, i32) {
    %c0_i32 = arith.constant 0 : i32
    %c0_i32_0 = arith.constant 0 : i32
    %c0_i32_1 = arith.constant 0 : i32
    return %c0_i32, %c0_i32_0 : i32, i32
  }
  func.func @transform_4(%arg0: i32) -> i32 {
    %c0_i32 = arith.constant 0 : i32
    %c0_i32_0 = arith.constant 0 : i32
    return %c0_i32 : i32
  }
  func.func @transform_5(%arg0: i32) -> (i32, i32) {
    %c0_i32 = arith.constant 0 : i32
    %c0_i32_0 = arith.constant 0 : i32
    return %c0_i32, %arg0 : i32, i32
  }
}

</mosaic_0001>

<llo_original>
// kernel: tpu_custom_call.1
$region0: #{tpu_custom_call.1}
  #allocation0 [shape = 'u32[]', space=smem, size = 0x4, offset = 0x4, fixed_abs, tag = 'smem constant byte address 0x4 - core index']
  #allocation1 [shape = 'u32[72,128]{1,0:T(1,128)}', space=vmem, size = 0x9000, scoped, tag = 'internal scratch']
  %s0 = inlined_call_operand.hbm [shape: f32[10,256], index: 0, kind: input, shape index: {}]
  %s1 = inlined_call_operand.vmem [shape: f32[10,4], index: 1, kind: input, shape index: {}]
  %s2 = inlined_call_operand.vmem [shape: f32[4], index: 2, kind: input, shape index: {}]
  %s3 = inlined_call_operand.vmem [shape: f32[4,2], index: 3, kind: input, shape index: {}]
  %s4 = inlined_call_operand.vmem [shape: f32[2], index: 4, kind: input, shape index: {}]
  %s5 = inlined_call_operand.hbm [shape: f32[2,256], index: 5, kind: output, shape index: {}]
  %s6 = sld [smem:[#allocation0]]
  $region73: #{tpu_custom_call.1} parent=0
    _
  %s8 = ssub.s32 1, %s6
  %s9 = scalar_select 0, %s8, %s6
  $region1: #{tpu_custom_call.1} parent=0
    #allocation2 [shape = 'u8[16384]{0}', space=vmem, size = 0x4000, scoped, tag = 'input window, operand 0']
    #allocation3 [shape = 's32[2]{0}', space=sflag, size = 0x8, scoped, tag = 'scoped memory for tpu_custom_call.1']
    #allocation4 [shape = 's32[2]{0}', space=sflag, size = 0x8, scoped, tag = 'scoped memory for tpu_custom_call.1']
    #allocation5 [shape = 's32[2]{0}', space=sflag, size = 0x8, scoped, tag = 'scoped memory for tpu_custom_call.1']
    #allocation6 [shape = 'u8[8192]{0}', space=smem, size = 0x2000, scoped, tag = 'input window, operand 1, single buffered']
    #allocation7 [shape = 'u8[512]{0}', space=smem, size = 0x200, scoped, tag = 'input window, operand 2, single buffered']
    #allocation8 [shape = 's32[1]{0}', space=sflag, size = 0x4, scoped, tag = 'scoped memory for tpu_custom_call.1']
    #allocation9 [shape = 'u8[2048]{0}', space=smem, size = 0x800, scoped, tag = 'input window, operand 3, single buffered']
    #allocation10 [shape = 'u8[512]{0}', space=smem, size = 0x200, scoped, tag = 'input window, operand 4, single buffered']
    #allocation11 [shape = 's32[1]{0}', space=sflag, size = 0x4, scoped, tag = 'scoped memory for tpu_custom_call.1']
    #allocation12 [shape = 'u8[2048]{0}', space=vmem, size = 0x800, scoped, tag = 'output window, operand 0']
    %10 = vsyncpa [#allocation3], 0
    %s11 = scalar_lea.sflag [#allocation3], 1
    %12 = vsyncpa %s11, 0
    %13 = vsyncpa [#allocation5], 0
    %14 = vsyncpa [#allocation8], 0
    %15 = vsyncpa [#allocation11], 0
    %16 = vsyncpa [#allocation4], 0
    %s17 = scalar_lea.sflag [#allocation4], 1
    %18 = vsyncpa %s17, 0
    loop: start=0, step=1, limit=4
    $region2: #{tpu_custom_call.1} parent=1 // loop_pre_header
      _
    $region3: #{tpu_custom_call.1} parent=1 // loop_header
      %s20 = sphi 0, %s24
      %p21 = scmp.ge.s32.totalorder %s20, 4
      %s30 = sphi 0, %s32
      %s33 = sphi 0, %s30
      %s34 = sphi 0, %s33
      %s50 = sphi 0, %s34
      %s54 = sphi 0, %s54
      %s56 = sphi 0, %s54
      %s57 = sphi 0, %s56
      %s71 = sphi 0, %s57
      %s75 = sphi 0, %s75
      %s77 = sphi 0, %s75
      %s78 = sphi 0, %s77
      %s92 = sphi 0, %s78
      %s96 = sphi 0, %s96
      %s98 = sphi 0, %s96
      %s99 = sphi 0, %s98
      %s113 = sphi 0, %s99
      %s117 = sphi 0, %s117
      %s119 = sphi 0, %s117
      %s120 = sphi 0, %s119
      %s134 = sphi 0, %s120
      %s140 = sphi 0, %s142
      %s143 = sphi 0, %s140
      %s144 = sphi 0, %s143
      %s160 = sphi 0, %s144
    $region4: #{tpu_custom_call.1} parent=1 // loop_header_branch
      %23 = sbr.rel (%p21) target = $region8
    $region5: #{tpu_custom_call.1} parent=1 // loop_body
      %s25 = ssub.s32 %s20, 1
      %s26 = ssub.s32 %s20, 2
      %s27 = sadd.s32 %s20, 1
      %s28 = ssub.s32 %s20, %s27
      %p29 = scmp.eq.s32.totalorder %s28, 0
      %s31 = sadd.s32 %s30, 1
      %s32 = scalar_select %p29, %s30, %s31
      %p35 = pneg %p29
      %p36 = scmp.eq.s32.totalorder %s20, 1
      %p37 = por %p35, %p36
      %p38 = scmp.ne.s32.totalorder %s30, %s33
      %p39 = scmp.eq.s32.totalorder %s20, 0
      %p40 = por %p38, %p39
      %p41 = scmp.ne.s32.totalorder %s30, %s33
      %p42 = scmp.eq.s32.totalorder %s25, 1
      %p43 = por %p41, %p42
      %p44 = scmp.ne.s32.totalorder %s33, %s34
      %p45 = scmp.eq.s32.totalorder %s25, 0
      %p46 = por %p44, %p45
      %p47 = scmp.ne.s32.totalorder %s33, %s34
      %p48 = scmp.eq.s32.totalorder %s26, 1
      %p49 = por %p47, %p48
      %p51 = scmp.ne.s32.totalorder %s34, %s50
      %p52 = scmp.eq.s32.totalorder %s26, 0
      %p53 = por %p51, %p52
      %s55 = sadd.s32 %s54, 1
      %p58 = scmp.eq.s32.totalorder %s20, 1
      %p59 = scmp.ne.s32.totalorder %s54, %s56
      %p60 = scmp.eq.s32.totalorder %s20, 0
      %p61 = por %p59, %p60
      %p62 = scmp.ne.s32.totalorder %s54, %s56
      %p63 = scmp.eq.s32.totalorder %s25, 1
      %p64 = por %p62, %p63
      %p65 = scmp.ne.s32.totalorder %s56, %s57
      %p66 = scmp.eq.s32.totalorder %s25, 0
      %p67 = por %p65, %p66
      %p68 = scmp.ne.s32.totalorder %s56, %s57
      %p69 = scmp.eq.s32.totalorder %s26, 1
      %p70 = por %p68, %p69
      %p72 = scmp.ne.s32.totalorder %s57, %s71
      %p73 = scmp.eq.s32.totalorder %s26, 0
      %p74 = por %p72, %p73
      %s76 = sadd.s32 %s75, 1
      %p79 = scmp.eq.s32.totalorder %s20, 1
      %p80 = scmp.ne.s32.totalorder %s75, %s77
      %p81 = scmp.eq.s32.totalorder %s20, 0
      %p82 = por %p80, %p81
      %p83 = scmp.ne.s32.totalorder %s75, %s77
      %p84 = scmp.eq.s32.totalorder %s25, 1
      %p85 = por %p83, %p84
      %p86 = scmp.ne.s32.totalorder %s77, %s78
      %p87 = scmp.eq.s32.totalorder %s25, 0
      %p88 = por %p86, %p87
      %p89 = scmp.ne.s32.totalorder %s77, %s78
      %p90 = scmp.eq.s32.totalorder %s26, 1
      %p91 = por %p89, %p90
      %p93 = scmp.ne.s32.totalorder %s78, %s92
      %p94 = scmp.eq.s32.totalorder %s26, 0
      %p95 = por %p93, %p94
      %s97 = sadd.s32 %s96, 1
      %p100 = scmp.eq.s32.totalorder %s20, 1
      %p101 = scmp.ne.s32.totalorder %s96, %s98
      %p102 = scmp.eq.s32.totalorder %s20, 0
      %p103 = por %p101, %p102
      %p104 = scmp.ne.s32.totalorder %s96, %s98
      %p105 = scmp.eq.s32.totalorder %s25, 1
      %p106 = por %p104, %p105
      %p107 = scmp.ne.s32.totalorder %s98, %s99
      %p108 = scmp.eq.s32.totalorder %s25, 0
      %p109 = por %p107, %p108
      %p110 = scmp.ne.s32.totalorder %s98, %s99
      %p111 = scmp.eq.s32.totalorder %s26, 1
      %p112 = por %p110, %p111
      %p114 = scmp.ne.s32.totalorder %s99, %s113
      %p115 = scmp.eq.s32.totalorder %s26, 0
      %p116 = por %p114, %p115
      %s118 = sadd.s32 %s117, 1
      %p121 = scmp.eq.s32.totalorder %s20, 1
      %p122 = scmp.ne.s32.totalorder %s117, %s119
      %p123 = scmp.eq.s32.totalorder %s20, 0
      %p124 = por %p122, %p123
      %p125 = scmp.ne.s32.totalorder %s117, %s119
      %p126 = scmp.eq.s32.totalorder %s25, 1
      %p127 = por %p125, %p126
      %p128 = scmp.ne.s32.totalorder %s119, %s120
      %p129 = scmp.eq.s32.totalorder %s25, 0
      %p130 = por %p128, %p129
      %p131 = scmp.ne.s32.totalorder %s119, %s120
      %p132 = scmp.eq.s32.totalorder %s26, 1
      %p133 = por %p131, %p132
      %p135 = scmp.ne.s32.totalorder %s120, %s134
      %p136 = scmp.eq.s32.totalorder %s26, 0
      %p137 = por %p135, %p136
      %s138 = ssub.s32 %s20, %s27
      %p139 = scmp.eq.s32.totalorder %s138, 0
      %s141 = sadd.s32 %s140, 1
      %s142 = scalar_select %p139, %s140, %s141
      %p145 = pneg %p139
      %p146 = scmp.eq.s32.totalorder %s20, 1
      %p147 = por %p145, %p146
      %p148 = scmp.ne.s32.totalorder %s140, %s143
      %p149 = scmp.eq.s32.totalorder %s20, 0
      %p150 = por %p148, %p149
      %p151 = scmp.ne.s32.totalorder %s140, %s143
      %p152 = scmp.eq.s32.totalorder %s25, 1
      %p153 = por %p151, %p152
      %p154 = scmp.ne.s32.totalorder %s143, %s144
      %p155 = scmp.eq.s32.totalorder %s25, 0
      %p156 = por %p154, %p155
      %p157 = scmp.ne.s32.totalorder %s143, %s144
      %p158 = scmp.eq.s32.totalorder %s26, 1
      %p159 = por %p157, %p158
      %p161 = scmp.ne.s32.totalorder %s144, %s160
      %p162 = scmp.eq.s32.totalorder %s26, 0
      %p163 = por %p161, %p162
      %p164 = scmp.le.s32.totalorder 1, %s20
      %p165 = scmp.lt.s32.totalorder %s20, 3
      %p166 = pnand %p164, %p165
      %p167 = pneg %p166
      // Predicated region
      $region9: #{tpu_custom_call.1} parent=5 // pred_check
        _
      $region10: #{tpu_custom_call.1} parent=5 // pred_check_branch
        %169 = sbr.rel (%p166) target = $region12
      $region11: #{tpu_custom_call.1} parent=5 // pred_region
        %s170 = ssub.s32 %s20, 1
        // Predicated region
        $region13: #{tpu_custom_call.1} parent=11 // pred_check
          %p171 = pneg %p67
        $region14: #{tpu_custom_call.1} parent=11 // pred_check_branch
          %173 = sbr.rel (%p171) target = $region16
        $region15: #{tpu_custom_call.1} parent=11 // pred_region
          %175 = vsyncadd [#allocation5], 0
          %s176 = sshll.u32 %s1, 4
          %s177 = int_to_ptr.vmem [resolvable:$true] %s176
          %182 = dma.vmem_to_smem %s177, 256, [#allocation6], [#allocation5], 128, 128, 8
        $region16: #{tpu_custom_call.1} parent=11 // pred_fallthru
          _
        // Predicated region
        $region17: #{tpu_custom_call.1} parent=11 // pred_check
          %p183 = pneg %p88
        $region18: #{tpu_custom_call.1} parent=11 // pred_check_branch
          %185 = sbr.rel (%p183) target = $region20
        $region19: #{tpu_custom_call.1} parent=11 // pred_region
          %187 = vsyncadd [#allocation8], 0
          %s189 = sshll.u32 %s2, 4
          %s190 = int_to_ptr.vmem [resolvable:$true] %s189
          %192 = dma.vmem_to_smem %s190, 16, [#allocation7], [#allocation8]
        $region20: #{tpu_custom_call.1} parent=11 // pred_fallthru
          _
        // Predicated region
        $region21: #{tpu_custom_call.1} parent=11 // pred_check
          %p193 = pneg %p109
        $region22: #{tpu_custom_call.1} parent=11 // pred_check_branch
          %195 = sbr.rel (%p193) target = $region24
        $region23: #{tpu_custom_call.1} parent=11 // pred_region
          %197 = vsyncadd [#allocation8], 0
          %s199 = sshll.u32 %s3, 4
          %s200 = int_to_ptr.vmem [resolvable:$true] %s199
          %202 = dma.vmem_to_smem %s200, 64, [#allocation9], [#allocation8]
        $region24: #{tpu_custom_call.1} parent=11 // pred_fallthru
          _
        // Predicated region
        $region25: #{tpu_custom_call.1} parent=11 // pred_check
          %p203 = pneg %p130
        $region26: #{tpu_custom_call.1} parent=11 // pred_check_branch
          %205 = sbr.rel (%p203) target = $region28
        $region27: #{tpu_custom_call.1} parent=11 // pred_region
          %207 = vsyncadd [#allocation11], 0
          %s209 = sshll.u32 %s4, 4
          %s210 = int_to_ptr.vmem [resolvable:$true] %s209
          %212 = dma.vmem_to_smem %s210, 16, [#allocation10], [#allocation11]
        $region28: #{tpu_custom_call.1} parent=11 // pred_fallthru
          _
      $region12: #{tpu_custom_call.1} parent=5 // pred_fallthru
        _
      %p213 = scmp.lt.s32.totalorder %s20, 2
      // Predicated region
      $region29: #{tpu_custom_call.1} parent=5 // pred_check
        %p214 = pneg %p213
      $region30: #{tpu_custom_call.1} parent=5 // pred_check_branch
        %216 = sbr.rel (%p214) target = $region32
      $region31: #{tpu_custom_call.1} parent=5 // pred_region
        // Predicated region
        $region33: #{tpu_custom_call.1} parent=31 // pred_check
          %p217 = pneg %p40
        $region34: #{tpu_custom_call.1} parent=31 // pred_check_branch
          %219 = sbr.rel (%p217) target = $region36
        $region35: #{tpu_custom_call.1} parent=31 // pred_region
          %s220 = sand.u32 %s30, 1
          %s221 = scalar_lea.sflag [#allocation3], %s220
          %s222 = sand.u32 %s30, 1
          %s223 = smul.addr %s222, 16
          %s224 = scalar_lea.vmem [#allocation2], %s223
          %226 = vsyncadd %s221, 0
          %s227 = smul.addr %s20, 8
          %s228 = scalar_lea.hbm %s0, %s227
          %s229 = sshll.u32 %s228, 4
          %s230 = int_to_ptr.hbm [resolvable:$true] %s229
          %s231 = sshll.u32 %s224, 4
          %s232 = int_to_ptr.vmem [resolvable:$true] %s231
          %237 = dma.hbm_to_vmem [thread:$0]  %s230, 256, %s232, %s221, 256, 128, 8
        $region36: #{tpu_custom_call.1} parent=31 // pred_fallthru
          _
      $region32: #{tpu_custom_call.1} parent=5 // pred_fallthru
        _
      %p238 = scmp.le.s32.totalorder 1, %s20
      %p239 = scmp.lt.s32.totalorder %s20, 3
      %p240 = pnand %p238, %p239
      %p241 = pneg %p240
      // Predicated region
      $region37: #{tpu_custom_call.1} parent=5 // pred_check
        _
      $region38: #{tpu_custom_call.1} parent=5 // pred_check_branch
        %243 = sbr.rel (%p240) target = $region40
      $region39: #{tpu_custom_call.1} parent=5 // pred_region
        %s244 = ssub.s32 %s20, 1
        %s245 = sand.u32 %s33, 1
        %s246 = scalar_lea.sflag [#allocation3], %s245
        %s247 = sand.u32 %s33, 1
        %s248 = smul.addr %s247, 16
        %s249 = scalar_lea.vmem [#allocation2], %s248
        // Predicated region
        $region41: #{tpu_custom_call.1} parent=39 // pred_check
          %p250 = pneg %p46
        $region42: #{tpu_custom_call.1} parent=39 // pred_check_branch
          %252 = sbr.rel (%p250) target = $region44
        $region43: #{tpu_custom_call.1} parent=39 // pred_region
          %254 = dma.done %s246, 256
        $region44: #{tpu_custom_call.1} parent=39 // pred_fallthru
          _
        // Predicated region
        $region45: #{tpu_custom_call.1} parent=39 // pred_check
          %p255 = pneg %p67
        $region46: #{tpu_custom_call.1} parent=39 // pred_check_branch
          %257 = sbr.rel (%p255) target = $region48
        $region47: #{tpu_custom_call.1} parent=39 // pred_region
          %259 = dma.done [#allocation5], 256
        $region48: #{tpu_custom_call.1} parent=39 // pred_fallthru
          _
        // Predicated region
        $region49: #{tpu_custom_call.1} parent=39 // pred_check
          %p260 = pneg %p88
        $region50: #{tpu_custom_call.1} parent=39 // pred_check_branch
          %262 = sbr.rel (%p260) target = $region52
        $region51: #{tpu_custom_call.1} parent=39 // pred_region
          %264 = dma.done [#allocation8], 16
        $region52: #{tpu_custom_call.1} parent=39 // pred_fallthru
          _
        // Predicated region
        $region53: #{tpu_custom_call.1} parent=39 // pred_check
          %p265 = pneg %p109
        $region54: #{tpu_custom_call.1} parent=39 // pred_check_branch
          %267 = sbr.rel (%p265) target = $region56
        $region55: #{tpu_custom_call.1} parent=39 // pred_region
          %269 = dma.done [#allocation8], 64
        $region56: #{tpu_custom_call.1} parent=39 // pred_fallthru
          _
        // Predicated region
        $region57: #{tpu_custom_call.1} parent=39 // pred_check
          %p270 = pneg %p130
        $region58: #{tpu_custom_call.1} parent=39 // pred_check_branch
          %272 = sbr.rel (%p270) target = $region60
        $region59: #{tpu_custom_call.1} parent=39 // pred_region
          %274 = dma.done [#allocation11], 16
        $region60: #{tpu_custom_call.1} parent=39 // pred_fallthru
          _
        %275 = sfence
        %s276 = sand.u32 %s33, 1
        %s277 = scalar_lea.sflag [#allocation3], %s276
        %s278 = sand.u32 %s33, 1
        %s279 = smul.addr %s278, 16
        %s280 = scalar_lea.vmem [#allocation2], %s279
        %p281 = pneg %p46
        %p282 = pneg %p43
        %p283 = pneg %p67
        %p284 = pneg %p64
        %p285 = pneg %p88
        %p286 = pneg %p85
        %p287 = pneg %p109
        %p288 = pneg %p106
        %p289 = pneg %p130
        %p290 = pneg %p127
        %p291 = pneg %p156
        %p292 = pneg %p153
        %s293 = sand.u32 %s143, 1
        %s294 = scalar_lea.sflag [#allocation4], %s293
        %s295 = sand.u32 %s143, 1
        %s296 = smul.addr %s295, 2
        %s297 = scalar_lea.vmem [#allocation12], %s296
        %v298 = vld [vmem:[%s249] sm:$0xff]
        %v299 = vld [vmem:[%s249 + $0x8] sm:$0x3]
        %v300 = vmul.f32 %v298, %v298
        %v301 = vmul.f32 %v299, %v299
        %v302 = vmul.f32 %v300, %v298
        %v303 = vmul.f32 %v301, %v299
        %v304 = vmul.f32 %v302, 0.044715
        %v305 = vmul.f32 %v303, 0.044715
        %v306 = vadd.f32 %v298, %v304
        %v307 = vadd.f32 %v299, %v305
        %v308 = vtanh.pop %v306
        %v309 = vtanh.pop %v307
        %s310 = sld [smem:[#allocation6]]
        %v311 = vstv %s310
        %v312 = vmul.f32 %v311, %v308
        %s313 = sld [smem:[#allocation6 + $0x80]]
        %v314 = vstv %s313
        %v315 = vmul.f32 %v314, %v308
        %v317 = vrot.slane %v315, 1
        %v319 = vadd.f32 %v312, %v317
        %s320 = sld [smem:[#allocation6 + $0x100]]
        %v321 = vstv %s320
        %v322 = vmul.f32 %v321, %v308
        %v324 = vrot.slane %v322, 2
        %v326 = vadd.f32 %v319, %v324
        %s327 = sld [smem:[#allocation6 + $0x180]]
        %v328 = vstv %s327
        %v329 = vmul.f32 %v328, %v308
        %v331 = vrot.slane %v329, 3
        %v333 = vadd.f32 %v326, %v331
        %s334 = sld [smem:[#allocation6 + $0x200]]
        %v335 = vstv %s334
        %v336 = vmul.f32 %v335, %v308
        %v338 = vrot.slane %v336, 4
        %v340 = vadd.f32 %v333, %v338
        %s341 = sld [smem:[#allocation6 + $0x280]]
        %v342 = vstv %s341
        %v343 = vmul.f32 %v342, %v308
        %v345 = vrot.slane %v343, 5
        %v347 = vadd.f32 %v340, %v345
        %s348 = sld [smem:[#allocation6 + $0x300]]
        %v349 = vstv %s348
        %v350 = vmul.f32 %v349, %v308
        %v352 = vrot.slane %v350, 6
        %v354 = vadd.f32 %v347, %v352
        %s355 = sld [smem:[#allocation6 + $0x380]]
        %v356 = vstv %s355
        %v357 = vmul.f32 %v356, %v308
        %v359 = vrot.slane %v357, 7
        %v361 = vadd.f32 %v354, %v359
        %s362 = sld [smem:[#allocation6 + $0x400]]
        %v363 = vstv %s362
        %v364 = vmul.f32 %v363, %v309
        %v365 = vadd.f32 %v361, %v364
        %s366 = sld [smem:[#allocation6 + $0x480]]
        %v367 = vstv %s366
        %v368 = vmul.f32 %v367, %v309
        %v370 = vrot.slane %v368, 1
        %v372 = vadd.f32 %v365, %v370
        %s373 = sld [smem:[#allocation7]]
        %v374 = vstv %s373
        %v375 = vadd.f32 %v372, %v374
        %v376 = vtanh.pop %v375
        %s377 = sld [smem:[#allocation6 + $0x1]]
        %v378 = vstv %s377
        %v379 = vmul.f32 %v378, %v308
        %s380 = sld [smem:[#allocation6 + $0x81]]
        %v381 = vstv %s380
        %v382 = vmul.f32 %v381, %v308
        %v384 = vrot.slane %v382, 1
        %v386 = vadd.f32 %v379, %v384
        %s387 = sld [smem:[#allocation6 + $0x101]]
        %v388 = vstv %s387
        %v389 = vmul.f32 %v388, %v308
        %v391 = vrot.slane %v389, 2
        %v393 = vadd.f32 %v386, %v391
        %s394 = sld [smem:[#allocation6 + $0x181]]
        %v395 = vstv %s394
        %v396 = vmul.f32 %v395, %v308
        %v398 = vrot.slane %v396, 3
        %v400 = vadd.f32 %v393, %v398
        %s401 = sld [smem:[#allocation6 + $0x201]]
        %v402 = vstv %s401
        %v403 = vmul.f32 %v402, %v308
        %v405 = vrot.slane %v403, 4
        %v407 = vadd.f32 %v400, %v405
        %s408 = sld [smem:[#allocation6 + $0x281]]
        %v409 = vstv %s408
        %v410 = vmul.f32 %v409, %v308
        %v412 = vrot.slane %v410, 5
        %v414 = vadd.f32 %v407, %v412
        %s415 = sld [smem:[#allocation6 + $0x301]]
        %v416 = vstv %s415
        %v417 = vmul.f32 %v416, %v308
        %v419 = vrot.slane %v417, 6
        %v421 = vadd.f32 %v414, %v419
        %s422 = sld [smem:[#allocation6 + $0x381]]
        %v423 = vstv %s422
        %v424 = vmul.f32 %v423, %v308
        %v426 = vrot.slane %v424, 7
        %v428 = vadd.f32 %v421, %v426
        %s429 = sld [smem:[#allocation6 + $0x401]]
        %v430 = vstv %s429
        %v431 = vmul.f32 %v430, %v309
        %v432 = vadd.f32 %v428, %v431
        %s433 = sld [smem:[#allocation6 + $0x481]]
        %v434 = vstv %s433
        %v435 = vmul.f32 %v434, %v309
        %v437 = vrot.slane %v435, 1
        %v439 = vadd.f32 %v432, %v437
        %s440 = sld [smem:[#allocation7 + $0x1]]
        %v441 = vstv %s440
        %v442 = vadd.f32 %v439, %v441
        %v443 = vtanh.pop %v442
        %s444 = sld [smem:[#allocation6 + $0x2]]
        %v445 = vstv %s444
        %v446 = vmul.f32 %v445, %v308
        %s447 = sld [smem:[#allocation6 + $0x82]]
        %v448 = vstv %s447
        %v449 = vmul.f32 %v448, %v308
        %v451 = vrot.slane %v449, 1
        %v453 = vadd.f32 %v446, %v451
        %s454 = sld [smem:[#allocation6 + $0x102]]
        %v455 = vstv %s454
        %v456 = vmul.f32 %v455, %v308
        %v458 = vrot.slane %v456, 2
        %v460 = vadd.f32 %v453, %v458
        %s461 = sld [smem:[#allocation6 + $0x182]]
        %v462 = vstv %s461
        %v463 = vmul.f32 %v462, %v308
        %v465 = vrot.slane %v463, 3
        %v467 = vadd.f32 %v460, %v465
        %s468 = sld [smem:[#allocation6 + $0x202]]
        %v469 = vstv %s468
        %v470 = vmul.f32 %v469, %v308
        %v472 = vrot.slane %v470, 4
        %v474 = vadd.f32 %v467, %v472
        %s475 = sld [smem:[#allocation6 + $0x282]]
        %v476 = vstv %s475
        %v477 = vmul.f32 %v476, %v308
        %v479 = vrot.slane %v477, 5
        %v481 = vadd.f32 %v474, %v479
        %s482 = sld [smem:[#allocation6 + $0x302]]
        %v483 = vstv %s482
        %v484 = vmul.f32 %v483, %v308
        %v486 = vrot.slane %v484, 6
        %v488 = vadd.f32 %v481, %v486
        %s489 = sld [smem:[#allocation6 + $0x382]]
        %v490 = vstv %s489
        %v491 = vmul.f32 %v490, %v308
        %v493 = vrot.slane %v491, 7
        %v495 = vadd.f32 %v488, %v493
        %s496 = sld [smem:[#allocation6 + $0x402]]
        %v497 = vstv %s496
        %v498 = vmul.f32 %v497, %v309
        %v499 = vadd.f32 %v495, %v498
        %s500 = sld [smem:[#allocation6 + $0x482]]
        %v501 = vstv %s500
        %v502 = vmul.f32 %v501, %v309
        %v504 = vrot.slane %v502, 1
        %v506 = vadd.f32 %v499, %v504
        %s507 = sld [smem:[#allocation7 + $0x2]]
        %v508 = vstv %s507
        %v509 = vadd.f32 %v506, %v508
        %v510 = vtanh.pop %v509
        %s511 = sld [smem:[#allocation6 + $0x3]]
        %v512 = vstv %s511
        %v513 = vmul.f32 %v512, %v308
        %s514 = sld [smem:[#allocation6 + $0x83]]
        %v515 = vstv %s514
        %v516 = vmul.f32 %v515, %v308
        %v518 = vrot.slane %v516, 1
        %v520 = vadd.f32 %v513, %v518
        %s521 = sld [smem:[#allocation6 + $0x103]]
        %v522 = vstv %s521
        %v523 = vmul.f32 %v522, %v308
        %v525 = vrot.slane %v523, 2
        %v527 = vadd.f32 %v520, %v525
        %s528 = sld [smem:[#allocation6 + $0x183]]
        %v529 = vstv %s528
        %v530 = vmul.f32 %v529, %v308
        %v532 = vrot.slane %v530, 3
        %v534 = vadd.f32 %v527, %v532
        %s535 = sld [smem:[#allocation6 + $0x203]]
        %v536 = vstv %s535
        %v537 = vmul.f32 %v536, %v308
        %v539 = vrot.slane %v537, 4
        %v541 = vadd.f32 %v534, %v539
        %s542 = sld [smem:[#allocation6 + $0x283]]
        %v543 = vstv %s542
        %v544 = vmul.f32 %v543, %v308
        %v546 = vrot.slane %v544, 5
        %v548 = vadd.f32 %v541, %v546
        %s549 = sld [smem:[#allocation6 + $0x303]]
        %v550 = vstv %s549
        %v551 = vmul.f32 %v550, %v308
        %v553 = vrot.slane %v551, 6
        %v555 = vadd.f32 %v548, %v553
        %s556 = sld [smem:[#allocation6 + $0x383]]
        %v557 = vstv %s556
        %v558 = vmul.f32 %v557, %v308
        %v560 = vrot.slane %v558, 7
        %v562 = vadd.f32 %v555, %v560
        %s563 = sld [smem:[#allocation6 + $0x403]]
        %v564 = vstv %s563
        %v565 = vmul.f32 %v564, %v309
        %v566 = vadd.f32 %v562, %v565
        %s567 = sld [smem:[#allocation6 + $0x483]]
        %v568 = vstv %s567
        %v569 = vmul.f32 %v568, %v309
        %v571 = vrot.slane %v569, 1
        %v573 = vadd.f32 %v566, %v571
        %s574 = sld [smem:[#allocation7 + $0x3]]
        %v575 = vstv %s574
        %v576 = vadd.f32 %v573, %v575
        %v577 = vtanh.pop %v576
        %s578 = sld [smem:[#allocation9]]
        %v579 = vstv %s578
        %v580 = vmul.f32 %v579, %v376
        %s581 = sld [smem:[#allocation9 + $0x80]]
        %v582 = vstv %s581
        %v583 = vmul.f32 %v582, %v443
        %v584 = vadd.f32 %v580, %v583
        %s585 = sld [smem:[#allocation9 + $0x100]]
        %v586 = vstv %s585
        %v587 = vmul.f32 %v586, %v510
        %v588 = vadd.f32 %v584, %v587
        %s589 = sld [smem:[#allocation9 + $0x180]]
        %v590 = vstv %s589
        %v591 = vmul.f32 %v590, %v577
        %v592 = vadd.f32 %v588, %v591
        %s593 = sld [smem:[#allocation10]]
        %v594 = vstv %s593
        %v595 = vadd.f32 %v592, %v594
        %s596 = sld [smem:[#allocation9 + $0x1]]
        %v597 = vstv %s596
        %v598 = vmul.f32 %v597, %v376
        %s599 = sld [smem:[#allocation9 + $0x81]]
        %v600 = vstv %s599
        %v601 = vmul.f32 %v600, %v443
        %v602 = vadd.f32 %v598, %v601
        %s603 = sld [smem:[#allocation9 + $0x101]]
        %v604 = vstv %s603
        %v605 = vmul.f32 %v604, %v510
        %v606 = vadd.f32 %v602, %v605
        %s607 = sld [smem:[#allocation9 + $0x181]]
        %v608 = vstv %s607
        %v609 = vmul.f32 %v608, %v577
        %v610 = vadd.f32 %v606, %v609
        %s611 = sld [smem:[#allocation10 + $0x1]]
        %v612 = vstv %s611
        %v613 = vadd.f32 %v610, %v612
        %v615 = vrot.slane %v613, 7
        %vm617 = vcmask 1040384
        %v618 = vsel %vm617, %v595, %v615
        %619 = vst [vmem:[%s297] sm:$0x3] %v618
        %s620 = sand.u32 %s143, 1
        %s621 = scalar_lea.sflag [#allocation4], %s620
        %s622 = sand.u32 %s143, 1
        %s623 = smul.addr %s622, 2
        %s624 = scalar_lea.vmem [#allocation12], %s623
        // Predicated region
        $region61: #{tpu_custom_call.1} parent=39 // pred_check
          %p625 = pneg %p153
        $region62: #{tpu_custom_call.1} parent=39 // pred_check_branch
          %627 = sbr.rel (%p625) target = $region64
        $region63: #{tpu_custom_call.1} parent=39 // pred_region
          %629 = vsyncadd %s621, 0
          %s630 = smul.addr %s25, 2
          %s631 = scalar_lea.hbm %s5, %s630
          %s633 = sshll.u32 %s624, 4
          %s634 = int_to_ptr.vmem [resolvable:$true] %s633
          %s635 = sshll.u32 %s631, 4
          %s636 = int_to_ptr.hbm [resolvable:$true] %s635
          %638 = dma.vmem_to_hbm [thread:$0]  %s634, 32, %s636, %s621
        $region64: #{tpu_custom_call.1} parent=39 // pred_fallthru
          _
      $region40: #{tpu_custom_call.1} parent=5 // pred_fallthru
        _
      %p639 = scmp.le.s32.totalorder 2, %s20
      // Predicated region
      $region65: #{tpu_custom_call.1} parent=5 // pred_check
        %p640 = pneg %p639
      $region66: #{tpu_custom_call.1} parent=5 // pred_check_branch
        %642 = sbr.rel (%p640) target = $region68
      $region67: #{tpu_custom_call.1} parent=5 // pred_region
        %s643 = ssub.s32 %s20, 2
        // Predicated region
        $region69: #{tpu_custom_call.1} parent=67 // pred_check
          %p644 = pneg %p159
        $region70: #{tpu_custom_call.1} parent=67 // pred_check_branch
          %646 = sbr.rel (%p644) target = $region72
        $region71: #{tpu_custom_call.1} parent=67 // pred_region
          %s647 = sand.u32 %s144, 1
          %s648 = scalar_lea.sflag [#allocation4], %s647
          %s649 = sand.u32 %s144, 1
          %s650 = smul.addr %s649, 2
          %s651 = scalar_lea.vmem [#allocation12], %s650
          %653 = dma.done %s648, 32
        $region72: #{tpu_custom_call.1} parent=67 // pred_fallthru
          _
      $region68: #{tpu_custom_call.1} parent=5 // pred_fallthru
        _
    $region6: #{tpu_custom_call.1} parent=1 // loop_footer
      %s24 = sadd.s32 1, %s20
    $region7: #{tpu_custom_call.1} parent=1 // loop_footer_branch
      %19 = sbr.rel target = $region3
    $region8: #{tpu_custom_call.1} parent=1 // loop_exit
      _
    %654 = vsyncpa [#allocation3], 1
    %s655 = scalar_lea.sflag [#allocation3], 1
    %656 = vsyncpa %s655, 1
    %657 = vsyncpa [#allocation4], 1
    %s658 = scalar_lea.sflag [#allocation4], 1
    %659 = vsyncpa %s658, 1
    %660 = vsyncpa [#allocation5], 1
    %s661 = scalar_lea.sflag [#allocation5], 1
    %662 = vsyncpa %s661, 1
    %663 = vsyncpa [#allocation8], 1
    %664 = vsyncpa [#allocation11], 1

</llo_original>
